<compile_context>
chip_gen: v7x
topology: tpu7x:2x2x1
jax: 0.10.0
libtpu: 0.0.40
codegen_flags: <defaults>
</compile_context>

<pallas_src>
import functools

import jax
import jax.numpy as jnp
from jax.experimental import pallas as pl
from jax.experimental.pallas import tpu as pltpu

_KPAD = 128  # vocab (52) padded to one full lane width


def _round_up(n, m):
    return (n + m - 1) // m * m


def _card_embedding_kernel(x_ref, tbl_ref, out_ref):
    x = x_ref[...]                                         # (TB, C) int32
    tb, num_cards = x.shape
    # Fold validity into the index: invalid (<0) -> padded (zero) table row.
    xc = jnp.where(x < 0, jnp.int32(_KPAD - 1), x)
    lane = jax.lax.broadcasted_iota(jnp.int32, (1, _KPAD), 1)  # (1, 128)

    # Per-card accumulation of vocab counts; no (TB, C, 128) temp.
    counts = jnp.zeros((tb, _KPAD), jnp.int32)
    for c in range(num_cards):                             # static unroll, C small
        counts = counts + (xc[:, c:c + 1] == lane).astype(jnp.int32)

    # Single int->f32 convert, then one MXU matmul against the fused table.
    out_ref[...] = jnp.dot(
        counts.astype(jnp.float32), tbl_ref[...],
        preferred_element_type=jnp.float32,
    ).astype(out_ref.dtype)


@functools.partial(jax.jit, static_argnames=("block_b",))
def card_embedding(x, card_table, rank_table, suit_table, *, block_b=2048):
    """x: (B, num_cards) int32 (negative = no card). Tables: (52,D),(13,D),(4,D).

    Returns (B, D) float32, matching the PyTorch CardEmbedding forward.
    """
    B, C = x.shape
    D = card_table.shape[1]
    Dp = _round_up(D, 128)  # lane-dense output columns (zero-padded, sliced off)

    # Fuse the three embeddings into one table (exact); pad to (128, Dp).
    combined = (card_table
                + jnp.repeat(rank_table, 4, axis=0)
                + jnp.tile(suit_table, (13, 1)))                  # (52, D)
    combined = jnp.pad(
        combined, ((0, _KPAD - combined.shape[0]), (0, Dp - D)))  # (128, Dp)

    # Batch tiling: pad B to a multiple of the tile (pad rows = -1 => zero rows).
    B8 = _round_up(B, 8)
    tb = min(block_b, B8)
    # v7x has 2 TensorCores; give the "parallel" grid >= 2 steps when possible.
    if B8 >= 16:
        tb = min(tb, _round_up(pl.cdiv(B8, 2), 8))
    Bp = _round_up(B, tb)
    if Bp != B:
        x = jnp.pad(x, ((0, Bp - B), (0, 0)), constant_values=-1)

    out = pl.pallas_call(
        _card_embedding_kernel,
        out_shape=jax.ShapeDtypeStruct((Bp, Dp), jnp.float32),
        grid_spec=pltpu.PrefetchScalarGridSpec(
            num_scalar_prefetch=0,
            grid=(Bp // tb,),
            in_specs=[
                pl.BlockSpec((tb, C), lambda i: (i, 0)),        # x tile
                pl.BlockSpec((_KPAD, Dp), lambda i: (0, 0)),    # table, resident
            ],
            out_specs=pl.BlockSpec((tb, Dp), lambda i: (i, 0)),
        ),
        compiler_params=pltpu.CompilerParams(
            dimension_semantics=("parallel",),
            vmem_limit_bytes=64 << 20,
        ),
        cost_estimate=pl.CostEstimate(
            flops=2 * Bp * _KPAD * Dp,
            transcendentals=0,
            bytes_accessed=Bp * C * 4 + _KPAD * Dp * 4 + Bp * Dp * 4,
        ),
    )(x, combined)

    return out[:B, :D]


def card_embedding_ref(x, card_table, rank_table, suit_table):
    """Pure-JAX reference matching the PyTorch forward exactly."""
    valid = (x >= 0).astype(jnp.float32)
    xc = jnp.maximum(x, 0)
    embs = (jnp.take(card_table, xc, axis=0)
            + jnp.take(rank_table, xc // 4, axis=0)
            + jnp.take(suit_table, xc % 4, axis=0))
    embs = embs * valid[..., None]
    return jnp.sum(embs, axis=1)


if __name__ == "__main__":
    key = jax.random.PRNGKey(0)
    k_card, k_rank, k_suit, k_x, k_mask = jax.random.split(key, 5)

    B, num_cards, embed_dim = 2, 8, 64

    # Deterministic parameter init, matching nn.Embedding default N(0, 1).
    card_table = jax.random.normal(k_card, (52, embed_dim), dtype=jnp.float32)
    rank_table = jax.random.normal(k_rank, (13, embed_dim), dtype=jnp.float32)
    suit_table = jax.random.normal(k_suit, (4, embed_dim), dtype=jnp.float32)

    # Card ids in [0, 52); randomly mark some slots invalid with -1.
    cards = jax.random.randint(k_x, (B, num_cards), 0, 52, dtype=jnp.int32)
    invalid = jax.random.bernoulli(k_mask, 0.25, (B, num_cards))
    x = jnp.where(invalid, jnp.int32(-1), cards)

    out = card_embedding(x, card_table, rank_table, suit_table)
    out = jax.block_until_ready(out)

    ref = card_embedding_ref(x, card_table, rank_table, suit_table)
    assert out.shape == (B, embed_dim)
    assert jnp.allclose(out, ref, atol=1e-4, rtol=1e-4), "mismatch vs reference"

    print("KERNEL_OK")
</pallas_src>

<mosaic_0001>
module attributes {stable_mosaic.version = 11 : i64} {
  func.func @_card_embedding_kernel(%arg0: i32, %arg1: memref<8x8xi32, #tpu.memory_space<vmem>>, %arg2: memref<128x128xf32, #tpu.memory_space<vmem>>, %arg3: memref<8x128xf32, #tpu.memory_space<vmem>>) attributes {dimension_semantics = [#tpu.dimension_semantics<parallel>], iteration_bounds = array<i64: 1>, scalar_prefetch = 0 : i64, scratch_operands = 0 : i64, tpu.core_type = #tpu.core_type<tc>, window_params = [{transform_indices = @transform_0, window_bounds = array<i64: 8, 8>}, {pipeline_mode = #tpu.pipeline_mode<synchronous>, transform_indices = @transform_1, window_bounds = array<i64: 128, 128>}, {transform_indices = @transform_2, window_bounds = array<i64: 8, 128>}]} {
    %c0 = arith.constant 0 : index
    %c0_0 = arith.constant 0 : index
    %0 = vector.load %arg1[%c0, %c0_0] : memref<8x8xi32, #tpu.memory_space<vmem>>, vector<8x8xi32>
    %c0_i32 = arith.constant 0 : i32
    %1 = vector.broadcast %c0_i32 : i32 to vector<8x8xi32>
    %2 = arith.cmpi slt, %0, %1 : vector<8x8xi32>
    %c127_i32 = arith.constant 127 : i32
    %3 = vector.broadcast %c127_i32 : i32 to vector<8x8xi32>
    %4 = arith.select %2, %3, %0 : vector<8x8xi1>, vector<8x8xi32>
    %5 = tpu.iota {dimensions = array<i32: 1>} : vector<1x128xi32>
    %c0_i32_1 = arith.constant 0 : i32
    %6 = vector.broadcast %c0_i32_1 : i32 to vector<8x128xi32>
    %7 = vector.extract_strided_slice %4 {offsets = [0, 0], sizes = [8, 1], strides = [1, 1]} : vector<8x8xi32> to vector<8x1xi32>
    %8 = vector.broadcast %7 : vector<8x1xi32> to vector<8x128xi32>
    %9 = vector.broadcast %5 : vector<1x128xi32> to vector<8x128xi32>
    %10 = arith.cmpi eq, %8, %9 : vector<8x128xi32>
    %11 = arith.extui %10 : vector<8x128xi1> to vector<8x128xi32>
    %12 = arith.addi %6, %11 : vector<8x128xi32>
    %13 = vector.extract_strided_slice %4 {offsets = [0, 1], sizes = [8, 1], strides = [1, 1]} : vector<8x8xi32> to vector<8x1xi32>
    %14 = vector.broadcast %13 : vector<8x1xi32> to vector<8x128xi32>
    %15 = vector.broadcast %5 : vector<1x128xi32> to vector<8x128xi32>
    %16 = arith.cmpi eq, %14, %15 : vector<8x128xi32>
    %17 = arith.extui %16 : vector<8x128xi1> to vector<8x128xi32>
    %18 = arith.addi %12, %17 : vector<8x128xi32>
    %19 = vector.extract_strided_slice %4 {offsets = [0, 2], sizes = [8, 1], strides = [1, 1]} : vector<8x8xi32> to vector<8x1xi32>
    %20 = vector.broadcast %19 : vector<8x1xi32> to vector<8x128xi32>
    %21 = vector.broadcast %5 : vector<1x128xi32> to vector<8x128xi32>
    %22 = arith.cmpi eq, %20, %21 : vector<8x128xi32>
    %23 = arith.extui %22 : vector<8x128xi1> to vector<8x128xi32>
    %24 = arith.addi %18, %23 : vector<8x128xi32>
    %25 = vector.extract_strided_slice %4 {offsets = [0, 3], sizes = [8, 1], strides = [1, 1]} : vector<8x8xi32> to vector<8x1xi32>
    %26 = vector.broadcast %25 : vector<8x1xi32> to vector<8x128xi32>
    %27 = vector.broadcast %5 : vector<1x128xi32> to vector<8x128xi32>
    %28 = arith.cmpi eq, %26, %27 : vector<8x128xi32>
    %29 = arith.extui %28 : vector<8x128xi1> to vector<8x128xi32>
    %30 = arith.addi %24, %29 : vector<8x128xi32>
    %31 = vector.extract_strided_slice %4 {offsets = [0, 4], sizes = [8, 1], strides = [1, 1]} : vector<8x8xi32> to vector<8x1xi32>
    %32 = vector.broadcast %31 : vector<8x1xi32> to vector<8x128xi32>
    %33 = vector.broadcast %5 : vector<1x128xi32> to vector<8x128xi32>
    %34 = arith.cmpi eq, %32, %33 : vector<8x128xi32>
    %35 = arith.extui %34 : vector<8x128xi1> to vector<8x128xi32>
    %36 = arith.addi %30, %35 : vector<8x128xi32>
    %37 = vector.extract_strided_slice %4 {offsets = [0, 5], sizes = [8, 1], strides = [1, 1]} : vector<8x8xi32> to vector<8x1xi32>
    %38 = vector.broadcast %37 : vector<8x1xi32> to vector<8x128xi32>
    %39 = vector.broadcast %5 : vector<1x128xi32> to vector<8x128xi32>
    %40 = arith.cmpi eq, %38, %39 : vector<8x128xi32>
    %41 = arith.extui %40 : vector<8x128xi1> to vector<8x128xi32>
    %42 = arith.addi %36, %41 : vector<8x128xi32>
    %43 = vector.extract_strided_slice %4 {offsets = [0, 6], sizes = [8, 1], strides = [1, 1]} : vector<8x8xi32> to vector<8x1xi32>
    %44 = vector.broadcast %43 : vector<8x1xi32> to vector<8x128xi32>
    %45 = vector.broadcast %5 : vector<1x128xi32> to vector<8x128xi32>
    %46 = arith.cmpi eq, %44, %45 : vector<8x128xi32>
    %47 = arith.extui %46 : vector<8x128xi1> to vector<8x128xi32>
    %48 = arith.addi %42, %47 : vector<8x128xi32>
    %49 = vector.extract_strided_slice %4 {offsets = [0, 7], sizes = [8, 1], strides = [1, 1]} : vector<8x8xi32> to vector<8x1xi32>
    %50 = vector.broadcast %49 : vector<8x1xi32> to vector<8x128xi32>
    %51 = vector.broadcast %5 : vector<1x128xi32> to vector<8x128xi32>
    %52 = arith.cmpi eq, %50, %51 : vector<8x128xi32>
    %53 = arith.extui %52 : vector<8x128xi1> to vector<8x128xi32>
    %54 = arith.addi %48, %53 : vector<8x128xi32>
    %55 = arith.sitofp %54 : vector<8x128xi32> to vector<8x128xf32>
    %c0_2 = arith.constant 0 : index
    %c0_3 = arith.constant 0 : index
    %56 = vector.load %arg2[%c0_2, %c0_3] : memref<128x128xf32, #tpu.memory_space<vmem>>, vector<128x128xf32>
    %cst = arith.constant dense<0.000000e+00> : vector<8x128xf32>
    %57 = tpu.matmul %55, %56, %cst {dimension_numbers = #tpu.dot_dimension_numbers<[1], [0], [0], [1], [0, 0, 1, 1], [], []>} : vector<8x128xf32>, vector<128x128xf32>, vector<8x128xf32> -> vector<8x128xf32>
    %c0_4 = arith.constant 0 : index
    %c0_5 = arith.constant 0 : index
    %58 = vector.load %arg3[%c0_4, %c0_5] : memref<8x128xf32, #tpu.memory_space<vmem>>, vector<8x128xf32>
    tpu.vector_store %arg3[%c0_4, %c0_5], %57 {strides = array<i32>} : memref<8x128xf32, #tpu.memory_space<vmem>>, vector<8x128xf32>,
    return
  }
  func.func @transform_0(%arg0: i32) -> (i32, i32) {
    %c0_i32 = arith.constant 0 : i32
    %c0_i32_0 = arith.constant 0 : i32
    return %arg0, %c0_i32 : i32, i32
  }
  func.func @transform_1(%arg0: i32) -> (i32, i32) {
    %c0_i32 = arith.constant 0 : i32
    %c0_i32_0 = arith.constant 0 : i32
    %c0_i32_1 = arith.constant 0 : i32
    return %c0_i32, %c0_i32_0 : i32, i32
  }
  func.func @transform_2(%arg0: i32) -> (i32, i32) {
    %c0_i32 = arith.constant 0 : i32
    %c0_i32_0 = arith.constant 0 : i32
    return %arg0, %c0_i32 : i32, i32
  }
}

</mosaic_0001>

<llo_original>
// kernel: card_embedding.1
$region0: #{card_embedding.1}
  #allocation0 [shape = 'u32[]', space=smem, size = 0x4, offset = 0x4, fixed_abs, tag = 'smem constant byte address 0x4 - core index']
  #allocation1 [shape = 'u32[144,128]{1,0:T(1,128)}', space=vmem, size = 0x12000, scoped, tag = 'internal scratch']
  %s0 = inlined_call_operand.hbm [shape: s32[8,8], index: 0, kind: input, shape index: {}]
  %s1 = inlined_call_operand.hbm [shape: f32[128,128], index: 1, kind: input, shape index: {}]
  %s2 = inlined_call_operand.hbm [shape: f32[8,128], index: 2, kind: output, shape index: {}]
  %s3 = sld [smem:[#allocation0]]
  $region26: #{card_embedding.1} parent=0
    _
  %s5 = ssub.s32 1, %s3
  %s6 = scalar_select 0, %s5, %s3
  $region1: #{card_embedding.1} parent=0
    #allocation2 [shape = 'u8[4096]{0}', space=vmem, size = 0x1000, scoped, tag = 'input window, operand 0, single buffered']
    #allocation3 [shape = 's32[1]{0}', space=sflag, size = 0x4, scoped, tag = 'scoped memory for card_embedding.1']
    #allocation4 [shape = 's32[1]{0}', space=sflag, size = 0x4, scoped, tag = 'scoped memory for card_embedding.1']
    #allocation5 [shape = 'u8[65536]{0}', space=vmem, size = 0x10000, scoped, tag = 'input window, operand 1, single buffered']
    #allocation6 [shape = 's32[1]{0}', space=sflag, size = 0x4, scoped, tag = 'scoped memory for card_embedding.1']
    #allocation7 [shape = 'u8[4096]{0}', space=vmem, size = 0x1000, scoped, tag = 'output window, operand 0, single buffered']
    %7 = vsyncpa [#allocation3], 0
    %8 = vsyncpa [#allocation6], 0
    %9 = vsyncpa [#allocation4], 0
    // Predicated region
    $region2: #{card_embedding.1} parent=1 // pred_check
      _
    $region3: #{card_embedding.1} parent=1 // pred_check_branch
      %11 = sbr.rel (0) target = $region5
    $region4: #{card_embedding.1} parent=1 // pred_region
      %s13 = ssub.s32 128, 128
      %14 = vsyncadd [#allocation3], %s13
      %s16 = sshll.u32 [#allocation2], 4
      %s17 = int_to_ptr.vmem [resolvable:$true] %s16
      %19 = dma.hbm_to_vmem [thread:$0]  %s0, 128, %s17, [#allocation3]
    $region5: #{card_embedding.1} parent=1 // pred_fallthru
      _
    // Predicated region
    $region6: #{card_embedding.1} parent=1 // pred_check
      _
    $region7: #{card_embedding.1} parent=1 // pred_check_branch
      %21 = sbr.rel (0) target = $region9
    $region8: #{card_embedding.1} parent=1 // pred_region
      %s23 = ssub.s32 2048, 2048
      %24 = vsyncadd [#allocation6], %s23
      %s25 = sshll.u32 [#allocation5], 4
      %s26 = int_to_ptr.vmem [resolvable:$true] %s25
      %31 = dma.hbm_to_vmem [thread:$0]  %s1, 2048, %s26, [#allocation6], 128, 128, 8
    $region9: #{card_embedding.1} parent=1 // pred_fallthru
      _
    // Predicated region
    $region10: #{card_embedding.1} parent=1 // pred_check
      _
    $region11: #{card_embedding.1} parent=1 // pred_check_branch
      %33 = sbr.rel (0) target = $region13
    $region12: #{card_embedding.1} parent=1 // pred_region
      %34 = dma.done [#allocation3], 128
    $region13: #{card_embedding.1} parent=1 // pred_fallthru
      _
    // Predicated region
    $region14: #{card_embedding.1} parent=1 // pred_check
      _
    $region15: #{card_embedding.1} parent=1 // pred_check_branch
      %36 = sbr.rel (0) target = $region17
    $region16: #{card_embedding.1} parent=1 // pred_region
      %37 = dma.done [#allocation6], 2048
    $region17: #{card_embedding.1} parent=1 // pred_fallthru
      _
    %v38 = vld [vmem:[#allocation2] sm:$0xff]
    %vm39 = vcmp.lt.s32.totalorder %v38, 0
    %v40 = vsel %vm39, 127, %v38
    %v41 = vlaneseq
    %v42 = vand.u32 %v41, 127
    %43 = vset.pattern.permute.xlu0 0
    %44 = vperm.xlu0 %43, %v40
    %v45 = vpop.permute.xlu0 %44
    %vm46 = vcmp.eq.s32.totalorder %v45, %v42
    %v47 = vsel %vm46, 1, 0
    %48 = vset.pattern.permute.xlu0 1
    %49 = vperm.xlu0 %48, %v40
    %v50 = vpop.permute.xlu0 %49
    %vm51 = vcmp.eq.s32.totalorder %v50, %v42
    %v52 = vsel %vm51, 1, 0
    %v53 = vadd.s32 %v47, %v52
    %54 = vset.pattern.permute.xlu0 2
    %55 = vperm.xlu0 %54, %v40
    %v56 = vpop.permute.xlu0 %55
    %vm57 = vcmp.eq.s32.totalorder %v56, %v42
    %v58 = vsel %vm57, 1, 0
    %v59 = vadd.s32 %v53, %v58
    %60 = vset.pattern.permute.xlu0 3
    %61 = vperm.xlu0 %60, %v40
    %v62 = vpop.permute.xlu0 %61
    %vm63 = vcmp.eq.s32.totalorder %v62, %v42
    %v64 = vsel %vm63, 1, 0
    %v65 = vadd.s32 %v59, %v64
    %66 = vset.pattern.permute.xlu0 4
    %67 = vperm.xlu0 %66, %v40
    %v68 = vpop.permute.xlu0 %67
    %vm69 = vcmp.eq.s32.totalorder %v68, %v42
    %v70 = vsel %vm69, 1, 0
    %v71 = vadd.s32 %v65, %v70
    %72 = vset.pattern.permute.xlu0 5
    %73 = vperm.xlu0 %72, %v40
    %v74 = vpop.permute.xlu0 %73
    %vm75 = vcmp.eq.s32.totalorder %v74, %v42
    %v76 = vsel %vm75, 1, 0
    %v77 = vadd.s32 %v71, %v76
    %78 = vset.pattern.permute.xlu0 6
    %79 = vperm.xlu0 %78, %v40
    %v80 = vpop.permute.xlu0 %79
    %vm81 = vcmp.eq.s32.totalorder %v80, %v42
    %v82 = vsel %vm81, 1, 0
    %v83 = vadd.s32 %v77, %v82
    %84 = vset.pattern.permute.xlu0 7
    %85 = vperm.xlu0 %84, %v40
    %v86 = vpop.permute.xlu0 %85
    %vm87 = vcmp.eq.s32.totalorder %v86, %v42
    %v88 = vsel %vm87, 1, 0
    %v89 = vadd.s32 %v83, %v88
    %v90 = vcvt.s32.f32 %v89
    %v91 = vld [vmem:[#allocation5] sm:$0xff]
    %v92 = vld [vmem:[#allocation5 + $0x8] sm:$0xff]
    %v93 = vld [vmem:[#allocation5 + $0x10] sm:$0xff]
    %v94 = vld [vmem:[#allocation5 + $0x18] sm:$0xff]
    %v95 = vld [vmem:[#allocation5 + $0x20] sm:$0xff]
    %v96 = vld [vmem:[#allocation5 + $0x28] sm:$0xff]
    %v97 = vld [vmem:[#allocation5 + $0x30] sm:$0xff]
    %v98 = vld [vmem:[#allocation5 + $0x38] sm:$0xff]
    %v99 = vld [vmem:[#allocation5 + $0x40] sm:$0xff]
    %v100 = vld [vmem:[#allocation5 + $0x48] sm:$0xff]
    %v101 = vld [vmem:[#allocation5 + $0x50] sm:$0xff]
    %v102 = vld [vmem:[#allocation5 + $0x58] sm:$0xff]
    %v103 = vld [vmem:[#allocation5 + $0x60] sm:$0xff]
    %v104 = vld [vmem:[#allocation5 + $0x68] sm:$0xff]
    %v105 = vld [vmem:[#allocation5 + $0x70] sm:$0xff]
    %v106 = vld [vmem:[#allocation5 + $0x78] sm:$0xff]
    %107 = vmatprep.subr.mxu0 0.0
    %108 = vmatpush1.msra.mxu0 %v91
    %109 = vmatprep.subr.mxu0 0.0
    %110 = vmatpush1.msra.mxu0 %v92
    %111 = vmatprep.subr.mxu0 0.0
    %112 = vmatpush1.msra.mxu0 %v93
    %113 = vmatprep.subr.mxu0 0.0
    %114 = vmatpush1.msra.mxu0 %v94
    %115 = vmatprep.subr.mxu0 0.0
    %116 = vmatpush1.msra.mxu0 %v95
    %117 = vmatprep.subr.mxu0 0.0
    %118 = vmatpush1.msra.mxu0 %v96
    %119 = vmatprep.subr.mxu0 0.0
    %120 = vmatpush1.msra.mxu0 %v97
    %121 = vmatprep.subr.mxu0 0.0
    %122 = vmatpush1.msra.mxu0 %v98
    %123 = vmatprep.subr.mxu0 0.0
    %124 = vmatpush1.msra.mxu0 %v99
    %125 = vmatprep.subr.mxu0 0.0
    %126 = vmatpush1.msra.mxu0 %v100
    %127 = vmatprep.subr.mxu0 0.0
    %128 = vmatpush1.msra.mxu0 %v101
    %129 = vmatprep.subr.mxu0 0.0
    %130 = vmatpush1.msra.mxu0 %v102
    %131 = vmatprep.subr.mxu0 0.0
    %132 = vmatpush1.msra.mxu0 %v103
    %133 = vmatprep.subr.mxu0 0.0
    %134 = vmatpush1.msra.mxu0 %v104
    %135 = vmatprep.subr.mxu0 0.0
    %136 = vmatpush1.msra.mxu0 %v105
    %137 = vmatprep.subr.mxu0 0.0
    %138 = vmatpush1.msra.mxu0 %v106
    %139 = vmatprep.subr.mxu0 0.0
    %140 = vmatpush1.msra.mxu0 0.0
    %141 = vmatprep.subr.mxu0 0.0
    %142 = vmatpush1.msra.mxu0 0.0
    %143 = vmatprep.subr.mxu0 0.0
    %144 = vmatpush1.msra.mxu0 0.0
    %145 = vmatprep.subr.mxu0 0.0
    %146 = vmatpush1.msra.mxu0 0.0
    %147 = vmatprep.subr.mxu0 0.0
    %148 = vmatpush1.msra.mxu0 0.0
    %149 = vmatprep.subr.mxu0 0.0
    %150 = vmatpush1.msra.mxu0 0.0
    %151 = vmatprep.subr.mxu0 0.0
    %152 = vmatpush1.msra.mxu0 0.0
    %153 = vmatprep.subr.mxu0 0.0
    %154 = vmatpush1.msra.mxu0 0.0
    %155 = vmatprep.subr.mxu0 0.0
    %156 = vmatpush1.msra.mxu0 0.0
    %157 = vmatprep.subr.mxu0 0.0
    %158 = vmatpush1.msra.mxu0 0.0
    %159 = vmatprep.subr.mxu0 0.0
    %160 = vmatpush1.msra.mxu0 0.0
    %161 = vmatprep.subr.mxu0 0.0
    %162 = vmatpush1.msra.mxu0 0.0
    %163 = vmatprep.subr.mxu0 0.0
    %164 = vmatpush1.msra.mxu0 0.0
    %165 = vmatprep.subr.mxu0 0.0
    %166 = vmatpush1.msra.mxu0 0.0
    %167 = vmatprep.subr.mxu0 0.0
    %168 = vmatpush1.msra.mxu0 0.0
    %169 = vmatprep.subr.mxu0 0.0
    %170 = vmatpush1.msra.mxu0 0.0
    %171 = vmatprep.mubr.f32.mxu0 0.0
    %172 = vmatmul.mubr.f32.gmra.mrb[0].mxu0 %v90
    %v173 = vpop.f32.mrb[0].mxu0
    %v174 = vadd.f32 0.0, %v173
    %v175 = vpop.f32.mrb[0].mxu0
    %176 = vdwg.mxu0
    %177 = vst [vmem:[#allocation7] sm:$0xff] %v174
    // Predicated region
    $region18: #{card_embedding.1} parent=1 // pred_check
      _
    $region19: #{card_embedding.1} parent=1 // pred_check_branch
      %179 = sbr.rel (0) target = $region21
    $region20: #{card_embedding.1} parent=1 // pred_region
      %s181 = ssub.s32 128, 128
      %182 = vsyncadd [#allocation4], %s181
      %s184 = sshll.u32 [#allocation7], 4
      %s185 = int_to_ptr.vmem [resolvable:$true] %s184
      %187 = dma.vmem_to_hbm [thread:$0]  %s185, 128, %s2, [#allocation4]
    $region21: #{card_embedding.1} parent=1 // pred_fallthru
      _
    // Predicated region
    $region22: #{card_embedding.1} parent=1 // pred_check
      _
    $region23: #{card_embedding.1} parent=1 // pred_check_branch
      %189 = sbr.rel (0) target = $region25
    $region24: #{card_embedding.1} parent=1 // pred_region
      %190 = dma.done [#allocation4], 128
    $region25: #{card_embedding.1} parent=1 // pred_fallthru
      _
    %191 = vsyncpa [#allocation3], 1
    %192 = vsyncpa [#allocation6], 1
    %193 = vsyncpa [#allocation4], 1

</llo_original>
